<compile_context>
chip_gen: v7x
topology: tpu7x:2x2x1
jax: 0.10.0
libtpu: 0.0.40
codegen_flags: <defaults>
</compile_context>

<pallas_src>
import functools
import math

import jax
import jax.numpy as jnp
from jax.experimental import pallas as pl
from jax.experimental.pallas import tpu as pltpu

# ---- module hyper-params (FeedForward(dim, hidden_dim), dropout=0.0) ----
DIM = 32
HIDDEN = 64
BATCH = 2
SEQ = 8
LN_EPS = 1e-5
LANES = 128
_INV_SQRT2 = 1.0 / math.sqrt(2.0)


def _round_up(x, m):
    return ((x + m - 1) // m) * m


def _erf_f32(x):
    # Abramowitz & Stegun 7.1.26 rational approximation, |error| <= 1.5e-7.
    p = 0.3275911
    a1, a2, a3, a4, a5 = (0.254829592, -0.284496736, 1.421413741,
                          -1.453152027, 1.061405429)
    ax = jnp.abs(x)
    # EUP reciprocal (exact variant keeps us well inside the 2e-5 tolerance).
    t = pl.reciprocal(1.0 + p * ax, approx=False)
    poly = ((((a5 * t + a4) * t + a3) * t + a2) * t + a1) * t
    e = 1.0 - poly * jnp.exp(-ax * ax)
    return jnp.where(x >= 0.0, e, -e)


def _gelu_exact(x):
    # Matches torch.nn.GELU() (approximate='none'): 0.5*x*(1+erf(x/sqrt(2)))
    return 0.5 * x * (1.0 + _erf_f32(x * _INV_SQRT2))


def _ffn_kernel(x_ref, w1_ref, w2_ref, bias_ref, o_ref, *, eps, dim):
    # x_ref: (T, 128) f32, lanes >= dim are zero-padded.
    x = x_ref[...]

    inv_d = 1.0 / dim
    lane = jax.lax.broadcasted_iota(jnp.int32, x.shape, 1)
    valid = lane < dim

    # ---- LayerNorm(dim) statistics over the D real lanes only ----
    mean = jnp.sum(x, axis=-1, keepdims=True) * inv_d          # zero pad lanes add 0
    xc = jnp.where(valid, x - mean, 0.0)                       # kill padded lanes
    var = jnp.sum(xc * xc, axis=-1, keepdims=True) * inv_d     # biased variance
    xn = xc * jax.lax.rsqrt(var + eps)                         # affine folded into w1/b1

    # ---- Linear(dim -> hidden_pad) + GELU ----
    # Padded hidden columns are exactly 0 (zero weight cols + zero bias) and
    # gelu(0) == 0, so padding never changes the result.
    h = (jnp.dot(xn, w1_ref[...], preferred_element_type=jnp.float32)
         + bias_ref[0:1, :])
    h = _gelu_exact(h)

    # ---- Linear(hidden_pad -> dim_pad): lane-dense (T, 128) output slab ----
    # Dropout(p=0.0) -> identity (eval mode).
    o_ref[...] = (jnp.dot(h, w2_ref[...], preferred_element_type=jnp.float32)
                  + bias_ref[1:2, :])


def prepare_params(gamma, beta, w1, b1, w2, b2):
    """One-time (init-time) parameter packing.  Keeps pad/fold HLOs out of the
    per-call path.  Right-multiply convention: w1 (D, H), w2 (H, D)."""
    D, H = w1.shape
    d_pad = _round_up(D, LANES)
    h_pad = _round_up(H, LANES)
    assert d_pad == LANES and h_pad == LANES, "toy shapes assumed <= 128"

    # Fold the LayerNorm elementwise affine into Linear1.
    w1f = gamma[:, None] * w1                    # (D, H)
    b1f = b1 + beta @ w1                         # (H,)

    w1p = jnp.zeros((d_pad, h_pad), jnp.float32).at[:D, :H].set(w1f)
    w2p = jnp.zeros((h_pad, d_pad), jnp.float32).at[:H, :D].set(w2)
    bias = (jnp.zeros((2, LANES), jnp.float32)
            .at[0, :H].set(b1f)                  # row 0: folded Linear1 bias
            .at[1, :D].set(b2))                  # row 1: Linear2 bias
    return w1p, w2p, bias


@jax.jit
def feedforward_forward(x, w1p, w2p, bias):
    """x: (B, N, D).  w1p/w2p/bias are the pre-packed params from prepare_params."""
    B, N, D = x.shape
    T = B * N

    # Per-call activation plumbing only: collapse batch*seq and pad lanes.
    x2 = jnp.pad(x.reshape(T, D), ((0, 0), (0, LANES - D)))

    vmem = pl.BlockSpec(memory_space=pltpu.MemorySpace.VMEM)
    slab = pl.pallas_call(
        functools.partial(_ffn_kernel, eps=LN_EPS, dim=D),
        out_shape=jax.ShapeDtypeStruct((T, LANES), x.dtype),
        in_specs=[vmem] * 4,
        out_specs=vmem,
    )(x2, w1p, w2p, bias)

    return slab[:, :D].reshape(B, N, D)


def feedforward_reference(x, gamma, beta, w1, b1, w2, b2):
    # pure-JAX reference with identical semantics to the PyTorch module
    mean = jnp.mean(x, axis=-1, keepdims=True)
    var = jnp.mean((x - mean) ** 2, axis=-1, keepdims=True)
    xn = (x - mean) / jnp.sqrt(var + LN_EPS) * gamma + beta
    h = jax.nn.gelu(xn @ w1 + b1, approximate=False)        # nn.GELU() (exact erf)
    return h @ w2 + b2                                      # dropout p=0.0 -> identity


if __name__ == "__main__":
    key = jax.random.PRNGKey(0)
    kx, kg, kb, k1, kb1, k2, kb2 = jax.random.split(key, 7)

    x = jax.random.normal(kx, (BATCH, SEQ, DIM), dtype=jnp.float32)

    # deterministic synthetic parameters (shapes match nn.Module __init__)
    gamma = 1.0 + 0.02 * jax.random.normal(kg, (DIM,), dtype=jnp.float32)  # LN weight
    beta = 0.02 * jax.random.normal(kb, (DIM,), dtype=jnp.float32)         # LN bias
    w1 = 0.05 * jax.random.normal(k1, (DIM, HIDDEN), dtype=jnp.float32)    # Linear1 W
    b1 = 0.02 * jax.random.normal(kb1, (HIDDEN,), dtype=jnp.float32)       # Linear1 b
    w2 = 0.05 * jax.random.normal(k2, (HIDDEN, DIM), dtype=jnp.float32)    # Linear2 W
    b2 = 0.02 * jax.random.normal(kb2, (DIM,), dtype=jnp.float32)          # Linear2 b

    # One-time parameter packing (fold LN affine, pad, pack biases).
    w1p, w2p, bias = prepare_params(gamma, beta, w1, b1, w2, b2)
    w1p, w2p, bias = jax.block_until_ready((w1p, w2p, bias))

    out = feedforward_forward(x, w1p, w2p, bias)
    out = jax.block_until_ready(out)

    ref = feedforward_reference(x, gamma, beta, w1, b1, w2, b2)
    assert out.shape == (BATCH, SEQ, DIM)
    assert jnp.allclose(out, ref, atol=2e-5, rtol=2e-5), "mismatch vs reference"

    print("KERNEL_OK")
</pallas_src>

<mosaic_0001>
module attributes {stable_mosaic.version = 11 : i64} {
  func.func @_ffn_kernel(%arg0: memref<16x128xf32, #tpu.memory_space<vmem>>, %arg1: memref<128x128xf32, #tpu.memory_space<vmem>>, %arg2: memref<128x128xf32, #tpu.memory_space<vmem>>, %arg3: memref<2x128xf32, #tpu.memory_space<vmem>>, %arg4: memref<16x128xf32, #tpu.memory_space<vmem>>) attributes {dimension_semantics = [], scalar_prefetch = 0 : i64, scratch_operands = 0 : i64, tpu.core_type = #tpu.core_type<tc>} {
    %c0 = arith.constant 0 : index
    %c0_0 = arith.constant 0 : index
    %0 = vector.load %arg0[%c0, %c0_0] : memref<16x128xf32, #tpu.memory_space<vmem>>, vector<16x128xf32>
    %1 = tpu.iota {dimensions = array<i32: 1>} : vector<16x128xi32>
    %c32_i32 = arith.constant 32 : i32
    %2 = vector.broadcast %c32_i32 : i32 to vector<16x128xi32>
    %3 = arith.cmpi slt, %1, %2 : vector<16x128xi32>
    %cst = arith.constant dense<0.000000e+00> : vector<16xf32>
    %4 = vector.multi_reduction <add>, %0, %cst [1] : vector<16x128xf32> to vector<16xf32>
    %5 = vector.shape_cast %4 : vector<16xf32> to vector<16x1xf32>
    %cst_1 = arith.constant 3.125000e-02 : f32
    %6 = vector.broadcast %cst_1 : f32 to vector<16x1xf32>
    %7 = arith.mulf %5, %6 : vector<16x1xf32>
    %8 = vector.broadcast %7 : vector<16x1xf32> to vector<16x128xf32>
    %9 = arith.subf %0, %8 : vector<16x128xf32>
    %cst_2 = arith.constant 0.000000e+00 : f32
    %10 = vector.broadcast %cst_2 : f32 to vector<16x128xf32>
    %11 = arith.select %3, %9, %10 : vector<16x128xi1>, vector<16x128xf32>
    %12 = arith.mulf %11, %11 : vector<16x128xf32>
    %cst_3 = arith.constant dense<0.000000e+00> : vector<16xf32>
    %13 = vector.multi_reduction <add>, %12, %cst_3 [1] : vector<16x128xf32> to vector<16xf32>
    %14 = vector.shape_cast %13 : vector<16xf32> to vector<16x1xf32>
    %cst_4 = arith.constant 3.125000e-02 : f32
    %15 = vector.broadcast %cst_4 : f32 to vector<16x1xf32>
    %16 = arith.mulf %14, %15 : vector<16x1xf32>
    %cst_5 = arith.constant 9.99999974E-6 : f32
    %17 = vector.broadcast %cst_5 : f32 to vector<16x1xf32>
    %18 = arith.addf %16, %17 : vector<16x1xf32>
    %19 = math.rsqrt %18 : vector<16x1xf32>
    %20 = vector.broadcast %19 : vector<16x1xf32> to vector<16x128xf32>
    %21 = arith.mulf %11, %20 : vector<16x128xf32>
    %c0_6 = arith.constant 0 : index
    %c0_7 = arith.constant 0 : index
    %22 = vector.load %arg1[%c0_6, %c0_7] : memref<128x128xf32, #tpu.memory_space<vmem>>, vector<128x128xf32>
    %cst_8 = arith.constant dense<0.000000e+00> : vector<16x128xf32>
    %23 = tpu.matmul %21, %22, %cst_8 {dimension_numbers = #tpu.dot_dimension_numbers<[1], [0], [0], [1], [0, 0, 1, 1], [], []>} : vector<16x128xf32>, vector<128x128xf32>, vector<16x128xf32> -> vector<16x128xf32>
    %c0_9 = arith.constant 0 : index
    %c0_10 = arith.constant 0 : index
    %24 = vector.load %arg3[%c0_9, %c0_10] : memref<2x128xf32, #tpu.memory_space<vmem>>, vector<1x128xf32>
    %25 = vector.broadcast %24 : vector<1x128xf32> to vector<16x128xf32>
    %26 = arith.addf %23, %25 : vector<16x128xf32>
    %cst_11 = arith.constant 5.000000e-01 : f32
    %27 = vector.broadcast %cst_11 : f32 to vector<16x128xf32>
    %28 = arith.mulf %27, %26 : vector<16x128xf32>
    %cst_12 = arith.constant 0.707106769 : f32
    %29 = vector.broadcast %cst_12 : f32 to vector<16x128xf32>
    %30 = arith.mulf %26, %29 : vector<16x128xf32>
    %31 = math.absf %30 : vector<16x128xf32>
    %cst_13 = arith.constant 0.327591091 : f32
    %32 = vector.broadcast %cst_13 : f32 to vector<16x128xf32>
    %33 = arith.mulf %32, %31 : vector<16x128xf32>
    %cst_14 = arith.constant 1.000000e+00 : f32
    %34 = vector.broadcast %cst_14 : f32 to vector<16x128xf32>
    %35 = arith.addf %34, %33 : vector<16x128xf32>
    %36 = tpu.reciprocal %35 : vector<16x128xf32> -> vector<16x128xf32>
    %cst_15 = arith.constant 1.06140542 : f32
    %37 = vector.broadcast %cst_15 : f32 to vector<16x128xf32>
    %38 = arith.mulf %37, %36 : vector<16x128xf32>
    %cst_16 = arith.constant -1.45315206 : f32
    %39 = vector.broadcast %cst_16 : f32 to vector<16x128xf32>
    %40 = arith.addf %38, %39 : vector<16x128xf32>
    %41 = arith.mulf %40, %36 : vector<16x128xf32>
    %cst_17 = arith.constant 1.42141378 : f32
    %42 = vector.broadcast %cst_17 : f32 to vector<16x128xf32>
    %43 = arith.addf %41, %42 : vector<16x128xf32>
    %44 = arith.mulf %43, %36 : vector<16x128xf32>
    %cst_18 = arith.constant -0.284496725 : f32
    %45 = vector.broadcast %cst_18 : f32 to vector<16x128xf32>
    %46 = arith.addf %44, %45 : vector<16x128xf32>
    %47 = arith.mulf %46, %36 : vector<16x128xf32>
    %cst_19 = arith.constant 0.254829586 : f32
    %48 = vector.broadcast %cst_19 : f32 to vector<16x128xf32>
    %49 = arith.addf %47, %48 : vector<16x128xf32>
    %50 = arith.mulf %49, %36 : vector<16x128xf32>
    %cst_20 = arith.constant 0.000000e+00 : f32
    %51 = vector.broadcast %cst_20 : f32 to vector<16x128xf32>
    %52 = arith.subf %51, %31 : vector<16x128xf32>
    %53 = arith.mulf %52, %31 : vector<16x128xf32>
    %54 = math.exp %53 : vector<16x128xf32>
    %55 = arith.mulf %50, %54 : vector<16x128xf32>
    %cst_21 = arith.constant 1.000000e+00 : f32
    %56 = vector.broadcast %cst_21 : f32 to vector<16x128xf32>
    %57 = arith.subf %56, %55 : vector<16x128xf32>
    %cst_22 = arith.constant 0.000000e+00 : f32
    %58 = vector.broadcast %cst_22 : f32 to vector<16x128xf32>
    %59 = arith.cmpf oge, %30, %58 : vector<16x128xf32>
    %cst_23 = arith.constant 0.000000e+00 : f32
    %60 = vector.broadcast %cst_23 : f32 to vector<16x128xf32>
    %61 = arith.subf %60, %57 : vector<16x128xf32>
    %62 = arith.select %59, %57, %61 : vector<16x128xi1>, vector<16x128xf32>
    %cst_24 = arith.constant 1.000000e+00 : f32
    %63 = vector.broadcast %cst_24 : f32 to vector<16x128xf32>
    %64 = arith.addf %63, %62 : vector<16x128xf32>
    %65 = arith.mulf %28, %64 : vector<16x128xf32>
    %c0_25 = arith.constant 0 : index
    %c0_26 = arith.constant 0 : index
    %66 = vector.load %arg2[%c0_25, %c0_26] : memref<128x128xf32, #tpu.memory_space<vmem>>, vector<128x128xf32>
    %cst_27 = arith.constant dense<0.000000e+00> : vector<16x128xf32>
    %67 = tpu.matmul %65, %66, %cst_27 {dimension_numbers = #tpu.dot_dimension_numbers<[1], [0], [0], [1], [0, 0, 1, 1], [], []>} : vector<16x128xf32>, vector<128x128xf32>, vector<16x128xf32> -> vector<16x128xf32>
    %c1 = arith.constant 1 : index
    %c0_28 = arith.constant 0 : index
    %68 = vector.load %arg3[%c1, %c0_28] : memref<2x128xf32, #tpu.memory_space<vmem>>, vector<1x128xf32>
    %69 = vector.broadcast %68 : vector<1x128xf32> to vector<16x128xf32>
    %70 = arith.addf %67, %69 : vector<16x128xf32>
    %c0_29 = arith.constant 0 : index
    %c0_30 = arith.constant 0 : index
    %71 = vector.load %arg4[%c0_29, %c0_30] : memref<16x128xf32, #tpu.memory_space<vmem>>, vector<16x128xf32>
    tpu.vector_store %arg4[%c0_29, %c0_30], %70 {strides = array<i32>} : memref<16x128xf32, #tpu.memory_space<vmem>>, vector<16x128xf32>,
    return
  }
}

</mosaic_0001>

<llo_original>
// kernel: feedforward_forward.1
$region0: #{feedforward_forward.1}
  #allocation0 [shape = 'u32[]', space=smem, size = 0x4, offset = 0x4, fixed_abs, tag = 'smem constant byte address 0x4 - core index']
  #allocation1 [shape = 'u32[144,128]{1,0:T(1,128)}', space=vmem, size = 0x12000, scoped, tag = 'internal scratch']
  %s0 = inlined_call_operand.vmem [shape: f32[16,128], index: 0, kind: input, shape index: {}]
  %s1 = inlined_call_operand.hbm [shape: f32[128,128], index: 1, kind: input, shape index: {}]
  %s2 = inlined_call_operand.hbm [shape: f32[128,128], index: 2, kind: input, shape index: {}]
  %s3 = inlined_call_operand.vmem [shape: f32[2,128], index: 3, kind: input, shape index: {}]
  %s4 = inlined_call_operand.vmem [shape: f32[16,128], index: 4, kind: output, shape index: {}]
  %s5 = sld [smem:[#allocation0]]
  $region34: #{feedforward_forward.1} parent=0
    _
  %s7 = ssub.s32 1, %s5
  %s8 = scalar_select 0, %s7, %s5
  $region1: #{feedforward_forward.1} parent=0
    #allocation2 [shape = 'u8[65536]{0}', space=vmem, size = 0x10000, scoped, tag = 'input window, operand 1, single buffered']
    #allocation3 [shape = 's32[1]{0}', space=sflag, size = 0x4, scoped, tag = 'scoped memory for feedforward_forward.1']
    #allocation4 [shape = 'u8[65536]{0}', space=vmem, size = 0x10000, scoped, tag = 'input window, operand 2, single buffered']
    #allocation5 [shape = 's32[1]{0}', space=sflag, size = 0x4, scoped, tag = 'scoped memory for feedforward_forward.1']
    %9 = vsyncpa [#allocation3], 0
    %10 = vsyncpa [#allocation5], 0
    // Predicated region
    $region2: #{feedforward_forward.1} parent=1 // pred_check
      _
    $region3: #{feedforward_forward.1} parent=1 // pred_check_branch
      %12 = sbr.rel (0) target = $region5
    $region4: #{feedforward_forward.1} parent=1 // pred_region
      _
    $region5: #{feedforward_forward.1} parent=1 // pred_fallthru
      _
    // Predicated region
    $region6: #{feedforward_forward.1} parent=1 // pred_check
      _
    $region7: #{feedforward_forward.1} parent=1 // pred_check_branch
      %14 = sbr.rel (0) target = $region9
    $region8: #{feedforward_forward.1} parent=1 // pred_region
      %s16 = ssub.s32 2048, 2048
      %17 = vsyncadd [#allocation3], %s16
      %s18 = sshll.u32 [#allocation2], 4
      %s19 = int_to_ptr.vmem [resolvable:$true] %s18
      %24 = dma.hbm_to_vmem [thread:$0]  %s1, 2048, %s19, [#allocation3], 128, 128, 8
    $region9: #{feedforward_forward.1} parent=1 // pred_fallthru
      _
    // Predicated region
    $region10: #{feedforward_forward.1} parent=1 // pred_check
      _
    $region11: #{feedforward_forward.1} parent=1 // pred_check_branch
      %26 = sbr.rel (0) target = $region13
    $region12: #{feedforward_forward.1} parent=1 // pred_region
      %s28 = ssub.s32 2048, 2048
      %29 = vsyncadd [#allocation5], %s28
      %s30 = sshll.u32 [#allocation4], 4
      %s31 = int_to_ptr.vmem [resolvable:$true] %s30
      %36 = dma.hbm_to_vmem [thread:$0]  %s2, 2048, %s31, [#allocation5], 128, 128, 8
    $region13: #{feedforward_forward.1} parent=1 // pred_fallthru
      _
    // Predicated region
    $region14: #{feedforward_forward.1} parent=1 // pred_check
      _
    $region15: #{feedforward_forward.1} parent=1 // pred_check_branch
      %38 = sbr.rel (0) target = $region17
    $region16: #{feedforward_forward.1} parent=1 // pred_region
      _
    $region17: #{feedforward_forward.1} parent=1 // pred_fallthru
      _
    // Predicated region
    $region18: #{feedforward_forward.1} parent=1 // pred_check
      _
    $region19: #{feedforward_forward.1} parent=1 // pred_check_branch
      %40 = sbr.rel (0) target = $region21
    $region20: #{feedforward_forward.1} parent=1 // pred_region
      %41 = dma.done [#allocation3], 2048
    $region21: #{feedforward_forward.1} parent=1 // pred_fallthru
      _
    // Predicated region
    $region22: #{feedforward_forward.1} parent=1 // pred_check
      _
    $region23: #{feedforward_forward.1} parent=1 // pred_check_branch
      %43 = sbr.rel (0) target = $region25
    $region24: #{feedforward_forward.1} parent=1 // pred_region
      %44 = dma.done [#allocation5], 2048
    $region25: #{feedforward_forward.1} parent=1 // pred_fallthru
      _
    %v45 = vld [vmem:[%s0] sm:$0xff]
    %v46 = vld [vmem:[%s0 + $0x8] sm:$0xff]
    %v47 = vlaneseq
    %v48 = vand.u32 %v47, 127
    %vm49 = vcmp.lt.s32.totalorder %v48, 32
    %50 = vadd.xlane.f32.xlu0 %v45
    %v51 = vpop.xlane.xlu0 %50
    %52 = vadd.xlane.f32.xlu0 %v46
    %v53 = vpop.xlane.xlu0 %52
    %v54 = vmul.f32 %v51, 0.03125
    %v55 = vmul.f32 %v53, 0.03125
    %v56 = vsub.f32 %v45, %v54
    %v57 = vsub.f32 %v46, %v55
    %v58 = vsel %vm49, %v56, 0.0
    %v59 = vsel %vm49, %v57, 0.0
    %v60 = vmul.f32 %v58, %v58
    %v61 = vmul.f32 %v59, %v59
    %62 = vadd.xlane.f32.xlu0 %v60
    %v63 = vpop.xlane.xlu0 %62
    %64 = vadd.xlane.f32.xlu0 %v61
    %v65 = vpop.xlane.xlu0 %64
    %v66 = vmul.f32 %v63, 0.03125
    %v67 = vmul.f32 %v65, 0.03125
    %v68 = vadd.f32 %v66, 1e-05
    %v69 = vadd.f32 %v67, 1e-05
    %v70 = vrsqrt.pop %v68
    %v71 = vrsqrt.pop %v69
    %v72 = vmul.f32 %v58, %v70
    %v73 = vmul.f32 %v59, %v71
    %v74 = vld [vmem:[#allocation2] sm:$0xff]
    %v75 = vld [vmem:[#allocation2 + $0x8] sm:$0xff]
    %v76 = vld [vmem:[#allocation2 + $0x10] sm:$0xff]
    %v77 = vld [vmem:[#allocation2 + $0x18] sm:$0xff]
    %v78 = vld [vmem:[#allocation2 + $0x20] sm:$0xff]
    %v79 = vld [vmem:[#allocation2 + $0x28] sm:$0xff]
    %v80 = vld [vmem:[#allocation2 + $0x30] sm:$0xff]
    %v81 = vld [vmem:[#allocation2 + $0x38] sm:$0xff]
    %v82 = vld [vmem:[#allocation2 + $0x40] sm:$0xff]
    %v83 = vld [vmem:[#allocation2 + $0x48] sm:$0xff]
    %v84 = vld [vmem:[#allocation2 + $0x50] sm:$0xff]
    %v85 = vld [vmem:[#allocation2 + $0x58] sm:$0xff]
    %v86 = vld [vmem:[#allocation2 + $0x60] sm:$0xff]
    %v87 = vld [vmem:[#allocation2 + $0x68] sm:$0xff]
    %v88 = vld [vmem:[#allocation2 + $0x70] sm:$0xff]
    %v89 = vld [vmem:[#allocation2 + $0x78] sm:$0xff]
    %v90 = vld [vmem:[%s3] sm:$0x1]
    %v91 = vlaneseq
    %v92 = vshrl.u32 %v91, 7
    %v93 = vsub.s32 0, %v92
    %v94 = vrot.slane %v90, %v93
    %95 = vmatprep.subr.mxu0 0.0
    %96 = vmatpush1.msra.mxu0 %v74
    %97 = vmatprep.subr.mxu0 0.0
    %98 = vmatpush1.msra.mxu0 %v75
    %99 = vmatprep.subr.mxu0 0.0
    %100 = vmatpush1.msra.mxu0 %v76
    %101 = vmatprep.subr.mxu0 0.0
    %102 = vmatpush1.msra.mxu0 %v77
    %103 = vmatprep.subr.mxu0 0.0
    %104 = vmatpush1.msra.mxu0 %v78
    %105 = vmatprep.subr.mxu0 0.0
    %106 = vmatpush1.msra.mxu0 %v79
    %107 = vmatprep.subr.mxu0 0.0
    %108 = vmatpush1.msra.mxu0 %v80
    %109 = vmatprep.subr.mxu0 0.0
    %110 = vmatpush1.msra.mxu0 %v81
    %111 = vmatprep.subr.mxu0 0.0
    %112 = vmatpush1.msra.mxu0 %v82
    %113 = vmatprep.subr.mxu0 0.0
    %114 = vmatpush1.msra.mxu0 %v83
    %115 = vmatprep.subr.mxu0 0.0
    %116 = vmatpush1.msra.mxu0 %v84
    %117 = vmatprep.subr.mxu0 0.0
    %118 = vmatpush1.msra.mxu0 %v85
    %119 = vmatprep.subr.mxu0 0.0
    %120 = vmatpush1.msra.mxu0 %v86
    %121 = vmatprep.subr.mxu0 0.0
    %122 = vmatpush1.msra.mxu0 %v87
    %123 = vmatprep.subr.mxu0 0.0
    %124 = vmatpush1.msra.mxu0 %v88
    %125 = vmatprep.subr.mxu0 0.0
    %126 = vmatpush1.msra.mxu0 %v89
    %127 = vmatprep.subr.mxu0 0.0
    %128 = vmatpush1.msra.mxu0 0.0
    %129 = vmatprep.subr.mxu0 0.0
    %130 = vmatpush1.msra.mxu0 0.0
    %131 = vmatprep.subr.mxu0 0.0
    %132 = vmatpush1.msra.mxu0 0.0
    %133 = vmatprep.subr.mxu0 0.0
    %134 = vmatpush1.msra.mxu0 0.0
    %135 = vmatprep.subr.mxu0 0.0
    %136 = vmatpush1.msra.mxu0 0.0
    %137 = vmatprep.subr.mxu0 0.0
    %138 = vmatpush1.msra.mxu0 0.0
    %139 = vmatprep.subr.mxu0 0.0
    %140 = vmatpush1.msra.mxu0 0.0
    %141 = vmatprep.subr.mxu0 0.0
    %142 = vmatpush1.msra.mxu0 0.0
    %143 = vmatprep.subr.mxu0 0.0
    %144 = vmatpush1.msra.mxu0 0.0
    %145 = vmatprep.subr.mxu0 0.0
    %146 = vmatpush1.msra.mxu0 0.0
    %147 = vmatprep.subr.mxu0 0.0
    %148 = vmatpush1.msra.mxu0 0.0
    %149 = vmatprep.subr.mxu0 0.0
    %150 = vmatpush1.msra.mxu0 0.0
    %151 = vmatprep.subr.mxu0 0.0
    %152 = vmatpush1.msra.mxu0 0.0
    %153 = vmatprep.subr.mxu0 0.0
    %154 = vmatpush1.msra.mxu0 0.0
    %155 = vmatprep.subr.mxu0 0.0
    %156 = vmatpush1.msra.mxu0 0.0
    %157 = vmatprep.subr.mxu0 0.0
    %158 = vmatpush1.msra.mxu0 0.0
    %159 = vmatprep.mubr.f32.mxu0 0.0
    %160 = vmatmul.mubr.f32.gmra.mrb[0].mxu0 %v72
    %v161 = vpop.f32.mrb[0].mxu0
    %v162 = vadd.f32 %v94, %v161
    %v163 = vpop.f32.mrb[0].mxu0
    %164 = vmatprep.mubr.f32.mxu0 0.0
    %165 = vmatmul.mubr.f32.gmra.mrb[0].mxu0 %v73
    %v166 = vpop.f32.mrb[0].mxu0
    %v167 = vadd.f32 %v94, %v166
    %v168 = vpop.f32.mrb[0].mxu0
    %169 = vdwg.mxu0
    %v170 = vmul.f32 %v162, 0.5
    %v171 = vmul.f32 %v167, 0.5
    %v172 = vmul.f32 %v162, 0.70710677
    %v173 = vmul.f32 %v167, 0.70710677
    %v174 = vand.u32 2147483647, %v172
    %v175 = vand.u32 2147483647, %v173
    %v176 = vmul.f32 %v174, 0.3275911
    %v177 = vmul.f32 %v175, 0.3275911
    %v178 = vadd.f32 %v176, 1.0
    %v179 = vadd.f32 %v177, 1.0
    %v180 = vrcp.pop %v178
    %v181 = vrcp.pop %v179
    %v182 = vmul.f32 %v180, 1.0614054
    %v183 = vmul.f32 %v181, 1.0614054
    %v184 = vadd.f32 %v182, -1.4531521
    %v185 = vadd.f32 %v183, -1.4531521
    %v186 = vmul.f32 %v184, %v180
    %v187 = vmul.f32 %v185, %v181
    %v188 = vadd.f32 %v186, 1.4214138
    %v189 = vadd.f32 %v187, 1.4214138
    %v190 = vmul.f32 %v188, %v180
    %v191 = vmul.f32 %v189, %v181
    %v192 = vadd.f32 %v190, -0.28449672
    %v193 = vadd.f32 %v191, -0.28449672
    %v194 = vmul.f32 %v192, %v180
    %v195 = vmul.f32 %v193, %v181
    %v196 = vadd.f32 %v194, 0.2548296
    %v197 = vadd.f32 %v195, 0.2548296
    %v198 = vmul.f32 %v196, %v180
    %v199 = vmul.f32 %v197, %v181
    %v200 = vsub.f32 0.0, %v174
    %v201 = vsub.f32 0.0, %v175
    %v202 = vmul.f32 %v200, %v174
    %v203 = vmul.f32 %v201, %v175
    %v204 = vmul.f32 %v202, 1.442695
    %v205 = vpow.pop %v204
    %v206 = vmul.f32 %v203, 1.442695
    %v207 = vpow.pop %v206
    %v208 = vmul.f32 %v198, %v205
    %v209 = vmul.f32 %v199, %v207
    %v210 = vsub.f32 1.0, %v208
    %v211 = vsub.f32 1.0, %v209
    %vm212 = vcmp.ge.f32.partialorder %v172, 0.0
    %vm213 = vcmp.ge.f32.partialorder %v173, 0.0
    %v214 = vsub.f32 0.0, %v210
    %v215 = vsub.f32 0.0, %v211
    %v216 = vsel %vm212, %v210, %v214
    %v217 = vsel %vm213, %v211, %v215
    %v218 = vadd.f32 %v216, 1.0
    %v219 = vadd.f32 %v217, 1.0
    %v220 = vmul.f32 %v170, %v218
    %v221 = vmul.f32 %v171, %v219
    %v222 = vld [vmem:[#allocation4] sm:$0xff]
    %v223 = vld [vmem:[#allocation4 + $0x8] sm:$0xff]
    %v224 = vld [vmem:[#allocation4 + $0x10] sm:$0xff]
    %v225 = vld [vmem:[#allocation4 + $0x18] sm:$0xff]
    %v226 = vld [vmem:[#allocation4 + $0x20] sm:$0xff]
    %v227 = vld [vmem:[#allocation4 + $0x28] sm:$0xff]
    %v228 = vld [vmem:[#allocation4 + $0x30] sm:$0xff]
    %v229 = vld [vmem:[#allocation4 + $0x38] sm:$0xff]
    %v230 = vld [vmem:[#allocation4 + $0x40] sm:$0xff]
    %v231 = vld [vmem:[#allocation4 + $0x48] sm:$0xff]
    %v232 = vld [vmem:[#allocation4 + $0x50] sm:$0xff]
    %v233 = vld [vmem:[#allocation4 + $0x58] sm:$0xff]
    %v234 = vld [vmem:[#allocation4 + $0x60] sm:$0xff]
    %v235 = vld [vmem:[#allocation4 + $0x68] sm:$0xff]
    %v236 = vld [vmem:[#allocation4 + $0x70] sm:$0xff]
    %v237 = vld [vmem:[#allocation4 + $0x78] sm:$0xff]
    %v238 = vld [vmem:[%s3 + $0x1] sm:$0x1]
    %v239 = vlaneseq
    %v240 = vshrl.u32 %v239, 7
    %v241 = vsub.s32 0, %v240
    %v242 = vrot.slane %v238, %v241
    %243 = vmatprep.subr.mxu0 0.0
    %244 = vmatpush1.msra.mxu0 %v222
    %245 = vmatprep.subr.mxu0 0.0
    %246 = vmatpush1.msra.mxu0 %v223
    %247 = vmatprep.subr.mxu0 0.0
    %248 = vmatpush1.msra.mxu0 %v224
    %249 = vmatprep.subr.mxu0 0.0
    %250 = vmatpush1.msra.mxu0 %v225
    %251 = vmatprep.subr.mxu0 0.0
    %252 = vmatpush1.msra.mxu0 %v226
    %253 = vmatprep.subr.mxu0 0.0
    %254 = vmatpush1.msra.mxu0 %v227
    %255 = vmatprep.subr.mxu0 0.0
    %256 = vmatpush1.msra.mxu0 %v228
    %257 = vmatprep.subr.mxu0 0.0
    %258 = vmatpush1.msra.mxu0 %v229
    %259 = vmatprep.subr.mxu0 0.0
    %260 = vmatpush1.msra.mxu0 %v230
    %261 = vmatprep.subr.mxu0 0.0
    %262 = vmatpush1.msra.mxu0 %v231
    %263 = vmatprep.subr.mxu0 0.0
    %264 = vmatpush1.msra.mxu0 %v232
    %265 = vmatprep.subr.mxu0 0.0
    %266 = vmatpush1.msra.mxu0 %v233
    %267 = vmatprep.subr.mxu0 0.0
    %268 = vmatpush1.msra.mxu0 %v234
    %269 = vmatprep.subr.mxu0 0.0
    %270 = vmatpush1.msra.mxu0 %v235
    %271 = vmatprep.subr.mxu0 0.0
    %272 = vmatpush1.msra.mxu0 %v236
    %273 = vmatprep.subr.mxu0 0.0
    %274 = vmatpush1.msra.mxu0 %v237
    %275 = vmatprep.subr.mxu0 0.0
    %276 = vmatpush1.msra.mxu0 0.0
    %277 = vmatprep.subr.mxu0 0.0
    %278 = vmatpush1.msra.mxu0 0.0
    %279 = vmatprep.subr.mxu0 0.0
    %280 = vmatpush1.msra.mxu0 0.0
    %281 = vmatprep.subr.mxu0 0.0
    %282 = vmatpush1.msra.mxu0 0.0
    %283 = vmatprep.subr.mxu0 0.0
    %284 = vmatpush1.msra.mxu0 0.0
    %285 = vmatprep.subr.mxu0 0.0
    %286 = vmatpush1.msra.mxu0 0.0
    %287 = vmatprep.subr.mxu0 0.0
    %288 = vmatpush1.msra.mxu0 0.0
    %289 = vmatprep.subr.mxu0 0.0
    %290 = vmatpush1.msra.mxu0 0.0
    %291 = vmatprep.subr.mxu0 0.0
    %292 = vmatpush1.msra.mxu0 0.0
    %293 = vmatprep.subr.mxu0 0.0
    %294 = vmatpush1.msra.mxu0 0.0
    %295 = vmatprep.subr.mxu0 0.0
    %296 = vmatpush1.msra.mxu0 0.0
    %297 = vmatprep.subr.mxu0 0.0
    %298 = vmatpush1.msra.mxu0 0.0
    %299 = vmatprep.subr.mxu0 0.0
    %300 = vmatpush1.msra.mxu0 0.0
    %301 = vmatprep.subr.mxu0 0.0
    %302 = vmatpush1.msra.mxu0 0.0
    %303 = vmatprep.subr.mxu0 0.0
    %304 = vmatpush1.msra.mxu0 0.0
    %305 = vmatprep.subr.mxu0 0.0
    %306 = vmatpush1.msra.mxu0 0.0
    %307 = vmatprep.mubr.f32.mxu0 0.0
    %308 = vmatmul.mubr.f32.gmra.mrb[0].mxu0 %v220
    %v309 = vpop.f32.mrb[0].mxu0
    %v310 = vadd.f32 %v242, %v309
    %v311 = vpop.f32.mrb[0].mxu0
    %312 = vmatprep.mubr.f32.mxu0 0.0
    %313 = vmatmul.mubr.f32.gmra.mrb[0].mxu0 %v221
    %v314 = vpop.f32.mrb[0].mxu0
    %v315 = vadd.f32 %v242, %v314
    %v316 = vpop.f32.mrb[0].mxu0
    %317 = vdwg.mxu0
    %318 = vst [vmem:[%s4] sm:$0xff] %v310
    %319 = vst [vmem:[%s4 + $0x8] sm:$0xff] %v315
    // Predicated region
    $region26: #{feedforward_forward.1} parent=1 // pred_check
      _
    $region27: #{feedforward_forward.1} parent=1 // pred_check_branch
      %321 = sbr.rel (0) target = $region29
    $region28: #{feedforward_forward.1} parent=1 // pred_region
      _
    $region29: #{feedforward_forward.1} parent=1 // pred_fallthru
      _
    // Predicated region
    $region30: #{feedforward_forward.1} parent=1 // pred_check
      _
    $region31: #{feedforward_forward.1} parent=1 // pred_check_branch
      %323 = sbr.rel (0) target = $region33
    $region32: #{feedforward_forward.1} parent=1 // pred_region
      _
    $region33: #{feedforward_forward.1} parent=1 // pred_fallthru
      _
    %324 = vsyncpa [#allocation3], 1
    %325 = vsyncpa [#allocation5], 1

</llo_original>
